<compile_context>
chip_gen: v7x
topology: tpu7x:2x2x1
jax: 0.10.0
libtpu: 0.0.40
codegen_flags: <defaults>
</compile_context>

<pallas_src>
import functools

import jax
import jax.numpy as jnp
from jax.experimental import pallas as pl
from jax.experimental.pallas import tpu as pltpu


def _round_up(n, m):
    return ((n + m - 1) // m) * m


def _new_gelu(x):
    # NewGELUActivation: 0.5*x*(1+tanh(sqrt(2/pi)*(x + 0.044715*x^3)))
    c = jnp.sqrt(2.0 / jnp.pi).astype(x.dtype)
    return 0.5 * x * (1.0 + jnp.tanh(c * (x + 0.044715 * (x * x * x))))


def _mlp_kernel_resident(x_ref, w1_ref, b1_ref, w2_ref, b2_ref, o_ref):
    """Whole hidden dim resident: single pass, no accumulator scratch."""
    x = x_ref[...].astype(w1_ref.dtype)          # cast on the VMEM tile
    h = jnp.dot(x, w1_ref[...], preferred_element_type=jnp.float32)
    h = h + b1_ref[...]                          # (1, H) f32 bias
    g = _new_gelu(h)                             # NewGELU in f32 (VPU/EUP)
    # dropout: identity (eval mode)
    y = jnp.dot(g.astype(w2_ref.dtype), w2_ref[...],
                preferred_element_type=jnp.float32)
    o_ref[...] = (y + b2_ref[...]).astype(o_ref.dtype)


def _mlp_kernel_tiled(x_ref, w1_ref, b1_ref, w2_ref, b2_ref, o_ref, acc_ref):
    """Grid (row tiles, hidden tiles); hidden axis is a reduction for c_proj."""
    k = pl.program_id(1)

    x = x_ref[...].astype(w1_ref.dtype)          # cast on the VMEM tile
    h = jnp.dot(x, w1_ref[...], preferred_element_type=jnp.float32)
    h = h + b1_ref[pl.ds(k, 1), :]               # b1 fully resident, slice row k
    g = _new_gelu(h)
    # dropout: identity (eval mode)
    partial = jnp.dot(g.astype(w2_ref.dtype), w2_ref[...],
                      preferred_element_type=jnp.float32)

    @pl.when(k == 0)
    def _first():                                # no zero-fill pass
        acc_ref[...] = partial

    @pl.when(k > 0)
    def _accum():
        acc_ref[...] += partial

    @pl.when(k == pl.num_programs(1) - 1)
    def _finalize():
        o_ref[...] = (acc_ref[...] + b2_ref[...]).astype(o_ref.dtype)


@functools.partial(jax.jit, static_argnames=("tm", "th"))
def gpt2_mlp(x, w1, b1, w2, b2, *, tm=512, th=512):
    """x: (B, S, E). w1: (E, 4E), b1: (4E,), w2: (4E, E), b2: (E,)."""
    B, S, E = x.shape
    H = w1.shape[1]
    M = B * S
    out_dtype = x.dtype
    x_bytes = jnp.dtype(x.dtype).itemsize
    out_bytes = jnp.dtype(out_dtype).itemsize

    # Weights in bf16 for the MXU (no-op if caller already passes bf16).
    # x is NOT cast or padded in the wrapper; it is cast in-kernel.
    w1b = w1.astype(jnp.bfloat16)
    w2b = w2.astype(jnp.bfloat16)
    b2f = b2.astype(jnp.float32).reshape(1, E)
    x2 = x.reshape(M, E)

    # Row tile: large (default 512) for arithmetic intensity; multiple of 16.
    tm = max(16, min(_round_up(tm, 16), _round_up(M, 16)))

    # Per-generation VMEM budget (96 MiB on 128 MiB parts, 48 MiB on v7x /
    # on a conservative fallback).
    try:
        info = pltpu.get_tpu_info()
        vmem_physical = int(getattr(info, "vmem_capacity_bytes", 0) or 0)
    except Exception:
        vmem_physical = 0
    if vmem_physical <= 0:
        vmem_physical = 64 << 20
    budget = vmem_physical * 3 // 4
    headroom = 4 << 20

    def resident_bytes(tm_, h_):
        return (2 * tm_ * E * x_bytes            # x tile (double-buffered)
                + 2 * 2 * E * h_ * 2             # W1 + W2 resident (bf16, 2 buf)
                + 2 * h_ * 4 + 2 * E * 4         # biases
                + 2 * tm_ * E * out_bytes        # out tile
                + tm_ * h_ * 6                   # h (f32) + g (bf16) temps
                + tm_ * E * 4)                   # y (f32) temp

    def tiled_bytes(tm_, th_, h_):
        return (2 * tm_ * E * x_bytes
                + 2 * 2 * E * th_ * 2            # W1 + W2 hidden slices
                + 2 * h_ * 4 + 2 * E * 4
                + 2 * tm_ * E * out_bytes
                + tm_ * E * 4                    # f32 accumulator scratch
                + tm_ * th_ * 6                  # h + g temps
                + tm_ * E * 4)                   # partial temp

    use_resident = resident_bytes(tm, H) + headroom <= budget

    if use_resident:
        # ---- whole-hidden-resident path (weights read from HBM once) -------
        n_row = pl.cdiv(M, tm)
        b1f = b1.astype(jnp.float32).reshape(1, H)
        grid = (n_row,)
        in_specs = [
            pl.BlockSpec((tm, E), lambda i: (i, 0)),   # x rows
            pl.BlockSpec((E, H), lambda i: (0, 0)),    # W1 (resident)
            pl.BlockSpec((1, H), lambda i: (0, 0)),    # b1 (resident)
            pl.BlockSpec((H, E), lambda i: (0, 0)),    # W2 (resident)
            pl.BlockSpec((1, E), lambda i: (0, 0)),    # b2 (resident)
        ]
        out_specs = pl.BlockSpec((tm, E), lambda i: (i, 0))
        scratch_shapes = []
        kernel = _mlp_kernel_resident
        dims = ("parallel",)
        need = resident_bytes(tm, H)
        weight_bytes = 2 * E * H * 2               # read exactly once
        H_eff = H
    else:
        # ---- hidden-tiled reduction path (large E / small-VMEM parts) ------
        th = max(128, min(_round_up(th, 128), _round_up(H, 128)))
        H_pad = _round_up(H, th)
        while tiled_bytes(tm, th, H_pad) + headroom > budget and th > 128:
            th = max(128, ((th // 2) // 128) * 128)
            H_pad = _round_up(H, th)
        while tiled_bytes(tm, th, H_pad) + headroom > budget and tm > 64:
            tm = max(64, ((tm // 2) // 16) * 16)
        n_row = pl.cdiv(M, tm)

        # Padded hidden columns/rows contribute exactly zero (gelu(0) == 0 and
        # zero rows of W2).
        if H_pad != H:
            w1b = jnp.pad(w1b, ((0, 0), (0, H_pad - H)))
            w2b = jnp.pad(w2b, ((0, H_pad - H), (0, 0)))
        nk = H_pad // th
        b1f = b1.astype(jnp.float32)
        if H_pad != H:
            b1f = jnp.pad(b1f, (0, H_pad - H))
        b1f = b1f.reshape(nk, th)

        grid = (n_row, nk)
        in_specs = [
            pl.BlockSpec((tm, E), lambda i, k: (i, 0)),    # x rows
            pl.BlockSpec((E, th), lambda i, k: (0, k)),    # W1 hidden slice
            pl.BlockSpec((nk, th), lambda i, k: (0, 0)),   # b1 (resident)
            pl.BlockSpec((th, E), lambda i, k: (k, 0)),    # W2 hidden slice
            pl.BlockSpec((1, E), lambda i, k: (0, 0)),     # b2 (resident)
        ]
        out_specs = pl.BlockSpec((tm, E), lambda i, k: (i, 0))
        scratch_shapes = [pltpu.VMEM((tm, E), jnp.float32)]
        kernel = _mlp_kernel_tiled
        dims = ("parallel", "arbitrary")
        need = tiled_bytes(tm, th, H_pad)
        weight_bytes = n_row * 2 * E * H_pad * 2   # re-streamed per row tile
        H_eff = H_pad

    vmem_limit = int(min(vmem_physical, max(32 << 20, need + headroom)))

    cost = pl.CostEstimate(
        flops=4 * M * E * H,                       # two matmuls
        transcendentals=M * H,                     # tanh in NewGELU
        bytes_accessed=(M * E * x_bytes + weight_bytes
                        + H_eff * 4 + E * 4 + M * E * out_bytes),
    )

    out = pl.pallas_call(
        kernel,
        out_shape=jax.ShapeDtypeStruct((M, E), out_dtype),
        grid_spec=pltpu.PrefetchScalarGridSpec(
            num_scalar_prefetch=0,
            grid=grid,
            in_specs=in_specs,
            out_specs=out_specs,
            scratch_shapes=scratch_shapes,
        ),
        compiler_params=pltpu.CompilerParams(
            dimension_semantics=dims,
            vmem_limit_bytes=vmem_limit,
        ),
        cost_estimate=cost,
    )(x2, w1b, b1f, w2b, b2f)

    return out.reshape(B, S, E)


def reference_mlp(x, w1, b1, w2, b2):
    h = jnp.einsum("bse,eh->bsh", x, w1) + b1
    g = 0.5 * h * (1.0 + jnp.tanh(jnp.sqrt(2.0 / jnp.pi)
                                  * (h + 0.044715 * h ** 3)))
    return jnp.einsum("bsh,he->bse", g, w2) + b2


if __name__ == "__main__":
    # Small shapes consistent with the module: batch=2, seq=8, n_embd=32.
    B, S, E = 2, 8, 32
    H = 4 * E

    key = jax.random.PRNGKey(0)
    kx, kw1, kb1, kw2, kb2 = jax.random.split(key, 5)

    x = jax.random.normal(kx, (B, S, E), dtype=jnp.float32)
    # HF Conv1D-style scale; non-zero biases to exercise the bias path.
    w1 = 0.02 * jax.random.normal(kw1, (E, H), dtype=jnp.float32)
    b1 = 0.02 * jax.random.normal(kb1, (H,), dtype=jnp.float32)
    w2 = 0.02 * jax.random.normal(kw2, (H, E), dtype=jnp.float32)
    b2 = 0.02 * jax.random.normal(kb2, (E,), dtype=jnp.float32)

    out = jax.block_until_ready(gpt2_mlp(x, w1, b1, w2, b2))
    ref = reference_mlp(x, w1, b1, w2, b2)

    assert out.shape == (B, S, E)
    # bf16 MXU operands -> relaxed tolerance vs f32 reference.
    max_err = float(jnp.max(jnp.abs(out - ref)))
    assert jnp.allclose(out, ref, atol=2e-3, rtol=2e-2), (
        f"mismatch vs reference, max_err={max_err}")

    print("KERNEL_OK")
</pallas_src>

<mosaic_0001>
module attributes {stable_mosaic.version = 11 : i64} {
  func.func @_mlp_kernel_resident(%arg0: i32, %arg1: memref<16x32xf32, #tpu.memory_space<vmem>>, %arg2: memref<32x128xbf16, #tpu.memory_space<vmem>>, %arg3: memref<1x128xf32, #tpu.memory_space<vmem>>, %arg4: memref<128x32xbf16, #tpu.memory_space<vmem>>, %arg5: memref<1x32xf32, #tpu.memory_space<vmem>>, %arg6: memref<16x32xf32, #tpu.memory_space<vmem>>) attributes {dimension_semantics = [#tpu.dimension_semantics<parallel>], iteration_bounds = array<i64: 1>, scalar_prefetch = 0 : i64, scratch_operands = 0 : i64, tpu.core_type = #tpu.core_type<tc>, window_params = [{transform_indices = @transform_0, window_bounds = array<i64: 16, 32>}, {pipeline_mode = #tpu.pipeline_mode<synchronous>, transform_indices = @transform_1, window_bounds = array<i64: 32, 128>}, {pipeline_mode = #tpu.pipeline_mode<synchronous>, transform_indices = @transform_2, window_bounds = array<i64: 1, 128>}, {pipeline_mode = #tpu.pipeline_mode<synchronous>, transform_indices = @transform_3, window_bounds = array<i64: 128, 32>}, {pipeline_mode = #tpu.pipeline_mode<synchronous>, transform_indices = @transform_4, window_bounds = array<i64: 1, 32>}, {transform_indices = @transform_5, window_bounds = array<i64: 16, 32>}]} {
    %c0 = arith.constant 0 : index
    %c0_0 = arith.constant 0 : index
    %0 = vector.load %arg1[%c0, %c0_0] : memref<16x32xf32, #tpu.memory_space<vmem>>, vector<16x32xf32>
    %1 = arith.truncf %0 : vector<16x32xf32> to vector<16x32xbf16>
    %c0_1 = arith.constant 0 : index
    %c0_2 = arith.constant 0 : index
    %2 = vector.load %arg2[%c0_1, %c0_2] : memref<32x128xbf16, #tpu.memory_space<vmem>>, vector<32x128xbf16>
    %cst = arith.constant dense<0.000000e+00> : vector<16x128xf32>
    %3 = tpu.matmul %1, %2, %cst {dimension_numbers = #tpu.dot_dimension_numbers<[1], [0], [0], [1], [0, 0, 1, 1], [], []>} : vector<16x32xbf16>, vector<32x128xbf16>, vector<16x128xf32> -> vector<16x128xf32>
    %c0_3 = arith.constant 0 : index
    %c0_4 = arith.constant 0 : index
    %4 = vector.load %arg3[%c0_3, %c0_4] : memref<1x128xf32, #tpu.memory_space<vmem>>, vector<1x128xf32>
    %5 = vector.broadcast %4 : vector<1x128xf32> to vector<16x128xf32>
    %6 = arith.addf %3, %5 : vector<16x128xf32>
    %cst_5 = arith.constant 0.636619746 : f32
    %7 = math.sqrt %cst_5 : f32
    %cst_6 = arith.constant 5.000000e-01 : f32
    %8 = vector.broadcast %cst_6 : f32 to vector<16x128xf32>
    %9 = arith.mulf %8, %6 : vector<16x128xf32>
    %10 = arith.mulf %6, %6 : vector<16x128xf32>
    %11 = arith.mulf %10, %6 : vector<16x128xf32>
    %cst_7 = arith.constant 4.471500e-02 : f32
    %12 = vector.broadcast %cst_7 : f32 to vector<16x128xf32>
    %13 = arith.mulf %12, %11 : vector<16x128xf32>
    %14 = arith.addf %6, %13 : vector<16x128xf32>
    %15 = vector.broadcast %7 : f32 to vector<16x128xf32>
    %16 = arith.mulf %15, %14 : vector<16x128xf32>
    %17 = math.tanh %16 : vector<16x128xf32>
    %cst_8 = arith.constant 1.000000e+00 : f32
    %18 = vector.broadcast %cst_8 : f32 to vector<16x128xf32>
    %19 = arith.addf %18, %17 : vector<16x128xf32>
    %20 = arith.mulf %9, %19 : vector<16x128xf32>
    %21 = arith.truncf %20 : vector<16x128xf32> to vector<16x128xbf16>
    %c0_9 = arith.constant 0 : index
    %c0_10 = arith.constant 0 : index
    %22 = vector.load %arg4[%c0_9, %c0_10] : memref<128x32xbf16, #tpu.memory_space<vmem>>, vector<128x32xbf16>
    %cst_11 = arith.constant dense<0.000000e+00> : vector<16x32xf32>
    %23 = tpu.matmul %21, %22, %cst_11 {dimension_numbers = #tpu.dot_dimension_numbers<[1], [0], [0], [1], [0, 0, 1, 1], [], []>} : vector<16x128xbf16>, vector<128x32xbf16>, vector<16x32xf32> -> vector<16x32xf32>
    %c0_12 = arith.constant 0 : index
    %c0_13 = arith.constant 0 : index
    %24 = vector.load %arg5[%c0_12, %c0_13] : memref<1x32xf32, #tpu.memory_space<vmem>>, vector<1x32xf32>
    %25 = vector.broadcast %24 : vector<1x32xf32> to vector<16x32xf32>
    %26 = arith.addf %23, %25 : vector<16x32xf32>
    %c0_14 = arith.constant 0 : index
    %c0_15 = arith.constant 0 : index
    %27 = vector.load %arg6[%c0_14, %c0_15] : memref<16x32xf32, #tpu.memory_space<vmem>>, vector<16x32xf32>
    tpu.vector_store %arg6[%c0_14, %c0_15], %26 {strides = array<i32>} : memref<16x32xf32, #tpu.memory_space<vmem>>, vector<16x32xf32>,
    return
  }
  func.func @transform_0(%arg0: i32) -> (i32, i32) {
    %c0_i32 = arith.constant 0 : i32
    %c0_i32_0 = arith.constant 0 : i32
    return %arg0, %c0_i32 : i32, i32
  }
  func.func @transform_1(%arg0: i32) -> (i32, i32) {
    %c0_i32 = arith.constant 0 : i32
    %c0_i32_0 = arith.constant 0 : i32
    %c0_i32_1 = arith.constant 0 : i32
    return %c0_i32, %c0_i32_0 : i32, i32
  }
  func.func @transform_2(%arg0: i32) -> (i32, i32) {
    %c0_i32 = arith.constant 0 : i32
    %c0_i32_0 = arith.constant 0 : i32
    %c0_i32_1 = arith.constant 0 : i32
    return %c0_i32, %c0_i32_0 : i32, i32
  }
  func.func @transform_3(%arg0: i32) -> (i32, i32) {
    %c0_i32 = arith.constant 0 : i32
    %c0_i32_0 = arith.constant 0 : i32
    %c0_i32_1 = arith.constant 0 : i32
    return %c0_i32, %c0_i32_0 : i32, i32
  }
  func.func @transform_4(%arg0: i32) -> (i32, i32) {
    %c0_i32 = arith.constant 0 : i32
    %c0_i32_0 = arith.constant 0 : i32
    %c0_i32_1 = arith.constant 0 : i32
    return %c0_i32, %c0_i32_0 : i32, i32
  }
  func.func @transform_5(%arg0: i32) -> (i32, i32) {
    %c0_i32 = arith.constant 0 : i32
    %c0_i32_0 = arith.constant 0 : i32
    return %arg0, %c0_i32 : i32, i32
  }
}

</mosaic_0001>

<llo_original>
// kernel: gpt2_mlp.1
$region0: #{gpt2_mlp.1}
  #allocation0 [shape = 'u32[]', space=smem, size = 0x4, offset = 0x4, fixed_abs, tag = 'smem constant byte address 0x4 - core index']
  #allocation1 [shape = 'u32[144,128]{1,0:T(1,128)}', space=vmem, size = 0x12000, scoped, tag = 'internal scratch']
  %s0 = inlined_call_operand.vmem [shape: f32[16,32], index: 0, kind: input, shape index: {}]
  %s1 = inlined_call_operand.vmem [shape: bf16[32,128], index: 1, kind: input, shape index: {}]
  %s2 = inlined_call_operand.vmem [shape: f32[1,128], index: 2, kind: input, shape index: {}]
  %s3 = inlined_call_operand.vmem [shape: bf16[128,32], index: 3, kind: input, shape index: {}]
  %s4 = inlined_call_operand.vmem [shape: f32[1,32], index: 4, kind: input, shape index: {}]
  %s5 = inlined_call_operand.hbm [shape: f32[16,32], index: 5, kind: output, shape index: {}]
  %s6 = sld [smem:[#allocation0]]
  $region30: #{gpt2_mlp.1} parent=0
    _
  %s8 = ssub.s32 1, %s6
  %s9 = scalar_select 0, %s8, %s6
  $region1: #{gpt2_mlp.1} parent=0
    #allocation2 [shape = 'u8[8192]{0}', space=vmem, size = 0x2000, scoped, tag = 'output window, operand 0, single buffered']
    #allocation3 [shape = 's32[1]{0}', space=sflag, size = 0x4, scoped, tag = 'scoped memory for gpt2_mlp.1']
    %10 = vsyncpa [#allocation3], 0
    // Predicated region
    $region2: #{gpt2_mlp.1} parent=1 // pred_check
      _
    $region3: #{gpt2_mlp.1} parent=1 // pred_check_branch
      %12 = sbr.rel (0) target = $region5
    $region4: #{gpt2_mlp.1} parent=1 // pred_region
      _
    $region5: #{gpt2_mlp.1} parent=1 // pred_fallthru
      _
    // Predicated region
    $region6: #{gpt2_mlp.1} parent=1 // pred_check
      _
    $region7: #{gpt2_mlp.1} parent=1 // pred_check_branch
      %14 = sbr.rel (0) target = $region9
    $region8: #{gpt2_mlp.1} parent=1 // pred_region
      _
    $region9: #{gpt2_mlp.1} parent=1 // pred_fallthru
      _
    // Predicated region
    $region10: #{gpt2_mlp.1} parent=1 // pred_check
      _
    $region11: #{gpt2_mlp.1} parent=1 // pred_check_branch
      %16 = sbr.rel (0) target = $region13
    $region12: #{gpt2_mlp.1} parent=1 // pred_region
      _
    $region13: #{gpt2_mlp.1} parent=1 // pred_fallthru
      _
    // Predicated region
    $region14: #{gpt2_mlp.1} parent=1 // pred_check
      _
    $region15: #{gpt2_mlp.1} parent=1 // pred_check_branch
      %18 = sbr.rel (0) target = $region17
    $region16: #{gpt2_mlp.1} parent=1 // pred_region
      _
    $region17: #{gpt2_mlp.1} parent=1 // pred_fallthru
      _
    // Predicated region
    $region18: #{gpt2_mlp.1} parent=1 // pred_check
      _
    $region19: #{gpt2_mlp.1} parent=1 // pred_check_branch
      %20 = sbr.rel (0) target = $region21
    $region20: #{gpt2_mlp.1} parent=1 // pred_region
      _
    $region21: #{gpt2_mlp.1} parent=1 // pred_fallthru
      _
    %v22 = vld [vmem:[%s0] sm:$0xff]
    %v23 = vld [vmem:[%s0 + $0x8] sm:$0xff]
    %v24 = vpack.c.bf16 %v23, %v22
    %v25 = vld [vmem:[%s1] sm:$0xf]
    %v26 = vld [vmem:[%s1 + $0x4] sm:$0xf]
    %v27 = vld [vmem:[%s1 + $0x8] sm:$0xf]
    %v28 = vld [vmem:[%s1 + $0xc] sm:$0xf]
    %v29 = vld [vmem:[%s2] sm:$0x1]
    %v31 = vlaneseq
    %v32 = vshrl.u32 %v31, 7
    %v33 = vsub.s32 0, %v32
    %v34 = vrot.slane %v29, %v33
    %v40 = vunpack.c.l.b16 %v25
    %v41 = vunpack.c.l.b16 %v26
    %v42 = vunpack.c.l.b16 %v27
    %v43 = vunpack.c.l.b16 %v28
    %v44 = vpack.c.b16 %v41, %v40
    %v45 = vpack.c.b16 %v43, %v42
    %vm48 = vcmask 261120
    %v50 = vsel %vm48, %v24, 0
    %52 = vmatprep.subr.bf16.mxu0 0
    %53 = vmatpush1.bf16.msra.mxu0 %v44
    %54 = vmatprep.subr.bf16.mxu0 0
    %55 = vmatpush1.bf16.msra.mxu0 %v45
    %56 = vmatprep.subr.bf16.mxu0 0
    %57 = vmatpush1.bf16.msra.mxu0 0
    %58 = vmatprep.subr.bf16.mxu0 0
    %59 = vmatpush1.bf16.msra.mxu0 0
    %60 = vmatprep.subr.bf16.mxu0 0
    %61 = vmatpush1.bf16.msra.mxu0 0
    %62 = vmatprep.subr.bf16.mxu0 0
    %63 = vmatpush1.bf16.msra.mxu0 0
    %64 = vmatprep.subr.bf16.mxu0 0
    %65 = vmatpush1.bf16.msra.mxu0 0
    %66 = vmatprep.subr.bf16.mxu0 0
    %67 = vmatpush1.bf16.msra.mxu0 0
    %68 = vmatprep.subr.bf16.mxu0 0
    %69 = vmatpush1.bf16.msra.mxu0 0
    %70 = vmatprep.subr.bf16.mxu0 0
    %71 = vmatpush1.bf16.msra.mxu0 0
    %72 = vmatprep.subr.bf16.mxu0 0
    %73 = vmatpush1.bf16.msra.mxu0 0
    %74 = vmatprep.subr.bf16.mxu0 0
    %75 = vmatpush1.bf16.msra.mxu0 0
    %76 = vmatprep.subr.bf16.mxu0 0
    %77 = vmatpush1.bf16.msra.mxu0 0
    %78 = vmatprep.subr.bf16.mxu0 0
    %79 = vmatpush1.bf16.msra.mxu0 0
    %80 = vmatprep.subr.bf16.mxu0 0
    %81 = vmatpush1.bf16.msra.mxu0 0
    %82 = vmatprep.subr.bf16.mxu0 0
    %83 = vmatpush1.bf16.msra.mxu0 0
    %84 = vmatprep.mubr.bf16.mxu0 0
    %85 = vmatmul.mubr.bf16.gmra.mrb[0].mxu0 %v50
    %v86 = vpop.f32.mrb[0].mxu0
    %v87 = vadd.f32 %v34, %v86
    %v88 = vpop.f32.mrb[0].mxu0
    %v89 = vpop.f32.mrb[0].mxu0
    %v90 = vadd.f32 %v34, %v89
    %v91 = vpop.f32.mrb[0].mxu0
    %92 = vdwg.mxu0
    %v93 = vmul.f32 %v87, 0.5
    %v94 = vmul.f32 %v90, 0.5
    %v95 = vmul.f32 %v87, %v87
    %v96 = vmul.f32 %v90, %v90
    %v97 = vmul.f32 %v95, %v87
    %v98 = vmul.f32 %v96, %v90
    %v99 = vmul.f32 %v97, 0.044715
    %v100 = vmul.f32 %v98, 0.044715
    %v101 = vadd.f32 %v87, %v99
    %v102 = vadd.f32 %v90, %v100
    %v103 = vmul.f32 %v101, 0.7978845
    %v104 = vmul.f32 %v102, 0.7978845
    %v105 = vtanh.pop %v103
    %v106 = vtanh.pop %v104
    %v107 = vadd.f32 %v105, 1.0
    %v108 = vadd.f32 %v106, 1.0
    %v109 = vmul.f32 %v93, %v107
    %v110 = vmul.f32 %v94, %v108
    %v111 = vpack.c.bf16 %v110, %v109
    %v112 = vld [vmem:[%s3] sm:$0xf]
    %v113 = vld [vmem:[%s3 + $0x4] sm:$0xf]
    %v114 = vld [vmem:[%s3 + $0x8] sm:$0xf]
    %v115 = vld [vmem:[%s3 + $0xc] sm:$0xf]
    %v116 = vld [vmem:[%s3 + $0x10] sm:$0xf]
    %v117 = vld [vmem:[%s3 + $0x14] sm:$0xf]
    %v118 = vld [vmem:[%s3 + $0x18] sm:$0xf]
    %v119 = vld [vmem:[%s3 + $0x1c] sm:$0xf]
    %v120 = vld [vmem:[%s3 + $0x20] sm:$0xf]
    %v121 = vld [vmem:[%s3 + $0x24] sm:$0xf]
    %v122 = vld [vmem:[%s3 + $0x28] sm:$0xf]
    %v123 = vld [vmem:[%s3 + $0x2c] sm:$0xf]
    %v124 = vld [vmem:[%s3 + $0x30] sm:$0xf]
    %v125 = vld [vmem:[%s3 + $0x34] sm:$0xf]
    %v126 = vld [vmem:[%s3 + $0x38] sm:$0xf]
    %v127 = vld [vmem:[%s3 + $0x3c] sm:$0xf]
    %v128 = vld [vmem:[%s4] sm:$0x1]
    %v130 = vlaneseq
    %v131 = vshrl.u32 %v130, 7
    %v132 = vsub.s32 0, %v131
    %v133 = vrot.slane %v128, %v132
    %v151 = vunpack.c.l.b16 %v112
    %v152 = vunpack.c.l.b16 %v113
    %v153 = vunpack.c.l.b16 %v114
    %v154 = vunpack.c.l.b16 %v115
    %v155 = vunpack.c.l.b16 %v116
    %v156 = vunpack.c.l.b16 %v117
    %v157 = vunpack.c.l.b16 %v118
    %v158 = vunpack.c.l.b16 %v119
    %v159 = vunpack.c.l.b16 %v120
    %v160 = vunpack.c.l.b16 %v121
    %v161 = vunpack.c.l.b16 %v122
    %v162 = vunpack.c.l.b16 %v123
    %v163 = vunpack.c.l.b16 %v124
    %v164 = vunpack.c.l.b16 %v125
    %v165 = vunpack.c.l.b16 %v126
    %v166 = vunpack.c.l.b16 %v127
    %v167 = vpack.c.b16 %v152, %v151
    %v168 = vpack.c.b16 %v154, %v153
    %v169 = vpack.c.b16 %v156, %v155
    %v170 = vpack.c.b16 %v158, %v157
    %v171 = vpack.c.b16 %v160, %v159
    %v172 = vpack.c.b16 %v162, %v161
    %v173 = vpack.c.b16 %v164, %v163
    %v174 = vpack.c.b16 %v166, %v165
    %183 = vmatprep.subr.bf16.mxu0 0
    %184 = vmatpush1.bf16.msra.mxu0 %v167
    %185 = vmatprep.subr.bf16.mxu0 0
    %186 = vmatpush1.bf16.msra.mxu0 %v168
    %187 = vmatprep.subr.bf16.mxu0 0
    %188 = vmatpush1.bf16.msra.mxu0 %v169
    %189 = vmatprep.subr.bf16.mxu0 0
    %190 = vmatpush1.bf16.msra.mxu0 %v170
    %191 = vmatprep.subr.bf16.mxu0 0
    %192 = vmatpush1.bf16.msra.mxu0 %v171
    %193 = vmatprep.subr.bf16.mxu0 0
    %194 = vmatpush1.bf16.msra.mxu0 %v172
    %195 = vmatprep.subr.bf16.mxu0 0
    %196 = vmatpush1.bf16.msra.mxu0 %v173
    %197 = vmatprep.subr.bf16.mxu0 0
    %198 = vmatpush1.bf16.msra.mxu0 %v174
    %199 = vmatprep.subr.bf16.mxu0 0
    %200 = vmatpush1.bf16.msra.mxu0 0
    %201 = vmatprep.subr.bf16.mxu0 0
    %202 = vmatpush1.bf16.msra.mxu0 0
    %203 = vmatprep.subr.bf16.mxu0 0
    %204 = vmatpush1.bf16.msra.mxu0 0
    %205 = vmatprep.subr.bf16.mxu0 0
    %206 = vmatpush1.bf16.msra.mxu0 0
    %207 = vmatprep.subr.bf16.mxu0 0
    %208 = vmatpush1.bf16.msra.mxu0 0
    %209 = vmatprep.subr.bf16.mxu0 0
    %210 = vmatpush1.bf16.msra.mxu0 0
    %211 = vmatprep.subr.bf16.mxu0 0
    %212 = vmatpush1.bf16.msra.mxu0 0
    %213 = vmatprep.subr.bf16.mxu0 0
    %214 = vmatpush1.bf16.msra.mxu0 0
    %215 = vmatprep.mubr.bf16.mxu0 0
    %216 = vmatmul.mubr.bf16.gmra.mrb[0].mxu0 %v111
    %v217 = vpop.f32.mrb[0].mxu0
    %v218 = vadd.f32 %v133, %v217
    %v219 = vpop.f32.mrb[0].mxu0
    %v220 = vpop.f32.mrb[0].mxu0
    %v221 = vadd.f32 %v133, %v220
    %v222 = vpop.f32.mrb[0].mxu0
    %223 = vdwg.mxu0
    %224 = vst.msk [vmem:[#allocation2] sm:$0xff] %vm48, %v218
    %225 = vst.msk [vmem:[#allocation2 + $0x8] sm:$0xff] %vm48, %v221
    // Predicated region
    $region22: #{gpt2_mlp.1} parent=1 // pred_check
      _
    $region23: #{gpt2_mlp.1} parent=1 // pred_check_branch
      %227 = sbr.rel (0) target = $region25
    $region24: #{gpt2_mlp.1} parent=1 // pred_region
      %s229 = ssub.s32 256, 256
      %230 = vsyncadd [#allocation3], %s229
      %s231 = sshll.u32 [#allocation2], 4
      %s232 = int_to_ptr.vmem [resolvable:$true] %s231
      %237 = dma.vmem_to_hbm [thread:$0]  %s232, 256, %s5, [#allocation3], 128, 128, 8
    $region25: #{gpt2_mlp.1} parent=1 // pred_fallthru
      _
    // Predicated region
    $region26: #{gpt2_mlp.1} parent=1 // pred_check
      _
    $region27: #{gpt2_mlp.1} parent=1 // pred_check_branch
      %239 = sbr.rel (0) target = $region29
    $region28: #{gpt2_mlp.1} parent=1 // pred_region
      %240 = dma.done [#allocation3], 256
    $region29: #{gpt2_mlp.1} parent=1 // pred_fallthru
      _
    %241 = vsyncpa [#allocation3], 1

</llo_original>
